<compile_context>
chip_gen: v6e
topology: v6e:2x2x1
jax: 0.10.0
libtpu: 0.0.40
codegen_flags: <defaults>
</compile_context>

<pallas_src>
import jax
import jax.numpy as jnp
from jax.experimental import pallas as pl
from jax.experimental.pallas import tpu as pltpu

NAME2DIM = {"move": 5, "attack_target": 16}
_TOTAL_OUT = sum(NAME2DIM.values())   # 21
_PADDED_OUT = 128                     # lane-dense fused output width

# VMEM sizing (bytes).  Budget sizes the batch tile; the limit is what we hand
# to Mosaic.  Both fit every generation (v7x physical VMEM = 64 MiB).
_VMEM_TILE_BUDGET = 24 << 20
_VMEM_LIMIT_CAP = 48 << 20

# Below this many input elements, XLA's fused GEMV beats kernel launch +
# per-grid-step overhead.
_SMALL_PROBLEM_ELEMS = 1 << 16


def _round_up(x, m):
    return ((x + m - 1) // m) * m


def _round_down(x, m):
    return (x // m) * m


def _fused_head_kernel(x_ref, w_ref, b_ref, out_ref):
    """One MXU matmul covering both heads.

    x_ref:   [tb, D]    input tile (double-buffered by BlockSpec)
    w_ref:   [D, 128]   fused, zero-padded weight (constant index_map)
    b_ref:   [1, 128]   fused, zero-padded bias
    out_ref: [tb, 128]  fused logits tile (lane-dense store)
    """
    out_ref[...] = (
        jnp.dot(x_ref[...], w_ref[...], preferred_element_type=jnp.float32)
        + b_ref[...]
    ).astype(out_ref.dtype)


def pack_params(params, dtype=jnp.float32):
    """Pre-pack both heads into a [D, 128] weight and a [1, 128] bias.

    Done ONCE at init time (not inside the forward path).
    params: dict name -> (weight [out, in] PyTorch layout, bias [out]).
    """
    ws, bs = [], []
    for name in NAME2DIM:
        w, b = params[name]
        ws.append(jnp.asarray(w, dtype).T)   # [D, out]
        bs.append(jnp.asarray(b, dtype))     # [out]
    w_cat = jnp.concatenate(ws, axis=1)      # [D, 21]
    b_cat = jnp.concatenate(bs, axis=0)      # [21]
    pad = _PADDED_OUT - _TOTAL_OUT
    w_pad = jnp.pad(w_cat, ((0, 0), (0, pad)))                 # [D, 128]
    b_pad = jnp.pad(b_cat, (0, pad)).reshape(1, _PADDED_OUT)   # [1, 128]
    return w_pad, b_pad


def _sublane(itemsize):
    """Min sublane multiple so the batch block lowers for any dtype."""
    if itemsize >= 4:
        return 8
    if itemsize == 2:
        return 16
    return 32


def _choose_tile(batch, d, x_itemsize, out_itemsize):
    """Pick the batch tile: fill the VMEM budget, align to the MXU, keep >=2
    grid steps when the batch allows it (v7x megacore)."""
    sub = _sublane(min(x_itemsize, out_itemsize))
    fixed = 2 * d * _PADDED_OUT * 4 + 2 * _PADDED_OUT * 4           # W + b, x2 buffers
    per_row = 2 * d * x_itemsize + 2 * _PADDED_OUT * out_itemsize   # x + out, x2 buffers
    cap = max(sub, (_VMEM_TILE_BUDGET - fixed) // per_row)
    if cap >= 256:
        cap = _round_down(cap, 256)       # full MXU passes on v6e/v7x
    else:
        cap = max(sub, _round_down(cap, sub))
    batch_aligned = _round_up(batch, sub)
    tb = min(cap, batch_aligned)
    # Guarantee >=2 grid steps for larger batches so both v7x TCs get work.
    if batch_aligned >= 512 and tb >= batch_aligned:
        half = _round_up(_round_up(batch_aligned, 2) // 2, 256)
        tb = max(256, min(tb, half))
    return tb


def _split_heads(fused):
    out, off = {}, 0
    for name, dim in NAME2DIM.items():
        out[name] = fused[:, off:off + dim]
        off += dim
    return out


def action_head_forward(x, packed_params, *, force_pallas=False):
    """x: [B, D]; packed_params: (w_pad [D,128], b_pad [1,128]) from pack_params."""
    w_pad, b_pad = packed_params
    batch, d = x.shape
    assert w_pad.shape == (d, _PADDED_OUT)

    # Small-problem fast path: let XLA fuse the tiny GEMV.
    if not force_pallas and batch * d <= _SMALL_PROBLEM_ELEMS:
        fused = (
            jnp.dot(x, w_pad, preferred_element_type=jnp.float32) + b_pad
        ).astype(x.dtype)
        return _split_heads(fused)

    x_itemsize = jnp.dtype(x.dtype).itemsize
    out_itemsize = x_itemsize
    tb = _choose_tile(batch, d, x_itemsize, out_itemsize)
    grid = (pl.cdiv(batch, tb),)

    fixed_bytes = 2 * d * _PADDED_OUT * 4 + 2 * _PADDED_OUT * 4
    step_bytes = fixed_bytes + tb * (2 * d * x_itemsize + 2 * _PADDED_OUT * out_itemsize)
    vmem_limit = int(min(_VMEM_LIMIT_CAP, max(2 * step_bytes, 16 << 20)))

    cost = pl.CostEstimate(
        flops=2 * batch * d * _PADDED_OUT,
        transcendentals=0,
        bytes_accessed=(
            batch * d * x_itemsize
            + d * _PADDED_OUT * 4
            + _PADDED_OUT * 4
            + batch * _PADDED_OUT * out_itemsize
        ),
    )

    fused = pl.pallas_call(
        _fused_head_kernel,
        out_shape=jax.ShapeDtypeStruct((batch, _PADDED_OUT), x.dtype),
        grid=grid,
        in_specs=[
            pl.BlockSpec((tb, d), lambda i: (i, 0)),            # x: batch-tiled
            pl.BlockSpec((d, _PADDED_OUT), lambda i: (0, 0)),   # W: VMEM-resident
            pl.BlockSpec((1, _PADDED_OUT), lambda i: (0, 0)),   # b: VMEM-resident
        ],
        out_specs=pl.BlockSpec((tb, _PADDED_OUT), lambda i: (i, 0)),
        compiler_params=pltpu.CompilerParams(
            dimension_semantics=("parallel",),   # megacore sharding on v7x
            vmem_limit_bytes=vmem_limit,
        ),
        cost_estimate=cost,
    )(x, w_pad, b_pad)

    return _split_heads(fused)


def init_params(input_dim, key):
    """Deterministic synthetic init (PyTorch Linear shapes: W [out,in], b [out])."""
    params = {}
    for i, (name, out_dim) in enumerate(NAME2DIM.items()):
        kw, kb = jax.random.split(jax.random.fold_in(key, i))
        bound = 1.0 / (input_dim ** 0.5)
        w = jax.random.uniform(kw, (out_dim, input_dim), jnp.float32, -bound, bound)
        b = jax.random.uniform(kb, (out_dim,), jnp.float32, -bound, bound)
        params[name] = (w, b)
    return params


if __name__ == "__main__":
    key = jax.random.PRNGKey(0)
    kx, kp, kx2, kp2 = jax.random.split(key, 4)

    def check(x, params, packed, force_pallas):
        out = action_head_forward(x, packed, force_pallas=force_pallas)
        jax.block_until_ready(out)
        for name in NAME2DIM:
            w, b = params[name]
            ref = x @ w.T + b
            assert out[name].shape == (x.shape[0], NAME2DIM[name]), name
            assert jnp.allclose(out[name], ref, atol=1e-4, rtol=1e-4), name

    # 1) Small shape consistent with the module's typical use.
    batch, input_dim = 8, 32
    x = jax.random.normal(kx, (batch, input_dim), jnp.float32)
    params = init_params(input_dim, kp)
    packed = pack_params(params)          # one-time weight packing
    check(x, params, packed, force_pallas=True)    # exercise the Pallas kernel
    check(x, params, packed, force_pallas=False)   # small-problem XLA fast path

    # 2) Ragged larger batch: multi-step grid + masked partial last block,
    #    no host-side padding or output slicing of rows.
    batch2, input_dim2 = 600, 256
    x2 = jax.random.normal(kx2, (batch2, input_dim2), jnp.float32)
    params2 = init_params(input_dim2, kp2)
    packed2 = pack_params(params2)
    check(x2, params2, packed2, force_pallas=True)

    print("KERNEL_OK")
</pallas_src>

<mosaic_0001>
module attributes {stable_mosaic.version = 11 : i64} {
  func.func @_fused_head_kernel(%arg0: i32, %arg1: memref<8x32xf32, #tpu.memory_space<vmem>>, %arg2: memref<32x128xf32, #tpu.memory_space<vmem>>, %arg3: memref<1x128xf32, #tpu.memory_space<vmem>>, %arg4: memref<8x128xf32, #tpu.memory_space<vmem>>) attributes {dimension_semantics = [#tpu.dimension_semantics<parallel>], iteration_bounds = array<i64: 1>, scalar_prefetch = 0 : i64, scratch_operands = 0 : i64, tpu.core_type = #tpu.core_type<tc>, window_params = [{transform_indices = @transform_0, window_bounds = array<i64: 8, 32>}, {pipeline_mode = #tpu.pipeline_mode<synchronous>, transform_indices = @transform_1, window_bounds = array<i64: 32, 128>}, {pipeline_mode = #tpu.pipeline_mode<synchronous>, transform_indices = @transform_2, window_bounds = array<i64: 1, 128>}, {transform_indices = @transform_3, window_bounds = array<i64: 8, 128>}]} {
    %c0 = arith.constant 0 : index
    %c0_0 = arith.constant 0 : index
    %0 = vector.load %arg1[%c0, %c0_0] : memref<8x32xf32, #tpu.memory_space<vmem>>, vector<8x32xf32>
    %c0_1 = arith.constant 0 : index
    %c0_2 = arith.constant 0 : index
    %1 = vector.load %arg2[%c0_1, %c0_2] : memref<32x128xf32, #tpu.memory_space<vmem>>, vector<32x128xf32>
    %cst = arith.constant dense<0.000000e+00> : vector<8x128xf32>
    %2 = tpu.matmul %0, %1, %cst {dimension_numbers = #tpu.dot_dimension_numbers<[1], [0], [0], [1], [0, 0, 1, 1], [], []>} : vector<8x32xf32>, vector<32x128xf32>, vector<8x128xf32> -> vector<8x128xf32>
    %c0_3 = arith.constant 0 : index
    %c0_4 = arith.constant 0 : index
    %3 = vector.load %arg3[%c0_3, %c0_4] : memref<1x128xf32, #tpu.memory_space<vmem>>, vector<1x128xf32>
    %4 = vector.broadcast %3 : vector<1x128xf32> to vector<8x128xf32>
    %5 = arith.addf %2, %4 : vector<8x128xf32>
    %c0_5 = arith.constant 0 : index
    %c0_6 = arith.constant 0 : index
    %6 = vector.load %arg4[%c0_5, %c0_6] : memref<8x128xf32, #tpu.memory_space<vmem>>, vector<8x128xf32>
    tpu.vector_store %arg4[%c0_5, %c0_6], %5 {strides = array<i32>} : memref<8x128xf32, #tpu.memory_space<vmem>>, vector<8x128xf32>,
    return
  }
  func.func @transform_0(%arg0: i32) -> (i32, i32) {
    %c0_i32 = arith.constant 0 : i32
    %c0_i32_0 = arith.constant 0 : i32
    return %arg0, %c0_i32 : i32, i32
  }
  func.func @transform_1(%arg0: i32) -> (i32, i32) {
    %c0_i32 = arith.constant 0 : i32
    %c0_i32_0 = arith.constant 0 : i32
    %c0_i32_1 = arith.constant 0 : i32
    return %c0_i32, %c0_i32_0 : i32, i32
  }
  func.func @transform_2(%arg0: i32) -> (i32, i32) {
    %c0_i32 = arith.constant 0 : i32
    %c0_i32_0 = arith.constant 0 : i32
    %c0_i32_1 = arith.constant 0 : i32
    return %c0_i32, %c0_i32_0 : i32, i32
  }
  func.func @transform_3(%arg0: i32) -> (i32, i32) {
    %c0_i32 = arith.constant 0 : i32
    %c0_i32_0 = arith.constant 0 : i32
    return %arg0, %c0_i32 : i32, i32
  }
}

</mosaic_0001>

<llo_original>
// kernel: tpu_custom_call.1
$region0: #{tpu_custom_call.1}
  #allocation0 [shape = 'u32[]', space=smem, size = 0x4, offset = 0x4, fixed_abs, tag = 'smem constant byte address 0x4 - core index']
  #allocation1 [shape = 'u32[144,128]{1,0:T(1,128)}', space=vmem, size = 0x12000, scoped, tag = 'internal scratch']
  %s0 = inlined_call_operand.hbm [shape: f32[8,32], index: 0, kind: input, shape index: {}]
  %s1 = inlined_call_operand.hbm [shape: f32[32,128], index: 1, kind: input, shape index: {}]
  %s2 = inlined_call_operand.vmem [shape: f32[1,128], index: 2, kind: input, shape index: {}]
  %s3 = inlined_call_operand.hbm [shape: f32[8,128], index: 3, kind: output, shape index: {}]
  %s4 = sld [smem:[#allocation0]]
  $region30: #{tpu_custom_call.1} parent=0
    _
  %s6 = ssub.s32 1, %s4
  %s7 = scalar_select 0, %s6, %s4
  $region1: #{tpu_custom_call.1} parent=0
    #allocation2 [shape = 'u8[4096]{0}', space=vmem, size = 0x1000, scoped, tag = 'input window, operand 0, single buffered']
    #allocation3 [shape = 's32[1]{0}', space=sflag, size = 0x4, scoped, tag = 'scoped memory for tpu_custom_call.1']
    #allocation4 [shape = 's32[1]{0}', space=sflag, size = 0x4, scoped, tag = 'scoped memory for tpu_custom_call.1']
    #allocation5 [shape = 'u8[16384]{0}', space=vmem, size = 0x4000, scoped, tag = 'input window, operand 1, single buffered']
    #allocation6 [shape = 's32[1]{0}', space=sflag, size = 0x4, scoped, tag = 'scoped memory for tpu_custom_call.1']
    #allocation7 [shape = 'u8[4096]{0}', space=vmem, size = 0x1000, scoped, tag = 'output window, operand 0, single buffered']
    %8 = vsyncpa [#allocation3], 0
    %9 = vsyncpa [#allocation6], 0
    %10 = vsyncpa [#allocation4], 0
    // Predicated region
    $region2: #{tpu_custom_call.1} parent=1 // pred_check
      _
    $region3: #{tpu_custom_call.1} parent=1 // pred_check_branch
      %12 = sbr.rel (0) target = $region5
    $region4: #{tpu_custom_call.1} parent=1 // pred_region
      %s14 = ssub.s32 128, 128
      %15 = vsyncadd [#allocation3], %s14
      %s17 = sshll.u32 [#allocation2], 4
      %s18 = int_to_ptr.vmem [resolvable:$true] %s17
      %20 = dma.hbm_to_vmem [thread:$0]  %s0, 128, %s18, [#allocation3]
    $region5: #{tpu_custom_call.1} parent=1 // pred_fallthru
      _
    // Predicated region
    $region6: #{tpu_custom_call.1} parent=1 // pred_check
      _
    $region7: #{tpu_custom_call.1} parent=1 // pred_check_branch
      %22 = sbr.rel (0) target = $region9
    $region8: #{tpu_custom_call.1} parent=1 // pred_region
      %s24 = ssub.s32 512, 512
      %25 = vsyncadd [#allocation6], %s24
      %s26 = sshll.u32 [#allocation5], 4
      %s27 = int_to_ptr.vmem [resolvable:$true] %s26
      %32 = dma.hbm_to_vmem [thread:$0]  %s1, 512, %s27, [#allocation6], 128, 128, 8
    $region9: #{tpu_custom_call.1} parent=1 // pred_fallthru
      _
    // Predicated region
    $region10: #{tpu_custom_call.1} parent=1 // pred_check
      _
    $region11: #{tpu_custom_call.1} parent=1 // pred_check_branch
      %34 = sbr.rel (0) target = $region13
    $region12: #{tpu_custom_call.1} parent=1 // pred_region
      _
    $region13: #{tpu_custom_call.1} parent=1 // pred_fallthru
      _
    // Predicated region
    $region14: #{tpu_custom_call.1} parent=1 // pred_check
      _
    $region15: #{tpu_custom_call.1} parent=1 // pred_check_branch
      %36 = sbr.rel (0) target = $region17
    $region16: #{tpu_custom_call.1} parent=1 // pred_region
      %37 = dma.done [#allocation3], 128
    $region17: #{tpu_custom_call.1} parent=1 // pred_fallthru
      _
    // Predicated region
    $region18: #{tpu_custom_call.1} parent=1 // pred_check
      _
    $region19: #{tpu_custom_call.1} parent=1 // pred_check_branch
      %39 = sbr.rel (0) target = $region21
    $region20: #{tpu_custom_call.1} parent=1 // pred_region
      %40 = dma.done [#allocation6], 512
    $region21: #{tpu_custom_call.1} parent=1 // pred_fallthru
      _
    %v41 = vld [vmem:[#allocation2] sm:$0xff]
    %v42 = vld [vmem:[#allocation5] sm:$0xff]
    %v43 = vld [vmem:[#allocation5 + $0x8] sm:$0xff]
    %v44 = vld [vmem:[#allocation5 + $0x10] sm:$0xff]
    %v45 = vld [vmem:[#allocation5 + $0x18] sm:$0xff]
    %v46 = vld [vmem:[%s2] sm:$0x1]
    %v48 = vlaneseq
    %v49 = vshrl.u32 %v48, 7
    %v50 = vsub.s32 0, %v49
    %v51 = vrot.slane %v46, %v50
    %vm53 = vcmask 261120
    %v55 = vsel %vm53, %v41, 0
    %57 = vmatprep.subr.mxu0 0.0
    %58 = vmatpush1.msra.mxu0 0.0
    %59 = vmatprep.subr.mxu0 0.0
    %60 = vmatpush1.msra.mxu0 0.0
    %61 = vmatprep.subr.mxu0 0.0
    %62 = vmatpush1.msra.mxu0 0.0
    %63 = vmatprep.subr.mxu0 0.0
    %64 = vmatpush1.msra.mxu0 0.0
    %65 = vmatprep.subr.mxu0 0.0
    %66 = vmatpush1.msra.mxu0 0.0
    %67 = vmatprep.subr.mxu0 0.0
    %68 = vmatpush1.msra.mxu0 0.0
    %69 = vmatprep.subr.mxu0 0.0
    %70 = vmatpush1.msra.mxu0 0.0
    %71 = vmatprep.subr.mxu0 0.0
    %72 = vmatpush1.msra.mxu0 0.0
    %73 = vmatprep.subr.mxu0 0.0
    %74 = vmatpush1.msra.mxu0 0.0
    %75 = vmatprep.subr.mxu0 0.0
    %76 = vmatpush1.msra.mxu0 0.0
    %77 = vmatprep.subr.mxu0 0.0
    %78 = vmatpush1.msra.mxu0 0.0
    %79 = vmatprep.subr.mxu0 0.0
    %80 = vmatpush1.msra.mxu0 0.0
    %81 = vmatprep.subr.mxu0 0.0
    %82 = vmatpush1.msra.mxu0 %v45
    %83 = vmatprep.subr.mxu0 0.0
    %84 = vmatpush1.msra.mxu0 %v44
    %85 = vmatprep.subr.mxu0 0.0
    %86 = vmatpush1.msra.mxu0 %v43
    %87 = vmatprep.subr.mxu0 0.0
    %88 = vmatpush1.msra.mxu0 %v42
    %89 = vmatprep.subr.mxu0 0.0
    %90 = vmatpush2.msra.mxu0 0.0
    %91 = vmatprep.subr.mxu0 0.0
    %92 = vmatpush2.msra.mxu0 0.0
    %93 = vmatprep.subr.mxu0 0.0
    %94 = vmatpush2.msra.mxu0 0.0
    %95 = vmatprep.subr.mxu0 0.0
    %96 = vmatpush2.msra.mxu0 0.0
    %97 = vmatprep.subr.mxu0 0.0
    %98 = vmatpush2.msra.mxu0 0.0
    %99 = vmatprep.subr.mxu0 0.0
    %100 = vmatpush2.msra.mxu0 0.0
    %101 = vmatprep.subr.mxu0 0.0
    %102 = vmatpush2.msra.mxu0 0.0
    %103 = vmatprep.subr.mxu0 0.0
    %104 = vmatpush2.msra.mxu0 0.0
    %105 = vmatprep.subr.mxu0 0.0
    %106 = vmatpush2.msra.mxu0 0.0
    %107 = vmatprep.subr.mxu0 0.0
    %108 = vmatpush2.msra.mxu0 0.0
    %109 = vmatprep.subr.mxu0 0.0
    %110 = vmatpush2.msra.mxu0 0.0
    %111 = vmatprep.subr.mxu0 0.0
    %112 = vmatpush2.msra.mxu0 0.0
    %113 = vmatprep.subr.mxu0 0.0
    %114 = vmatpush2.msra.mxu0 0.0
    %115 = vmatprep.subr.mxu0 0.0
    %116 = vmatpush2.msra.mxu0 0.0
    %117 = vmatprep.subr.mxu0 0.0
    %118 = vmatpush2.msra.mxu0 0.0
    %119 = vmatprep.subr.mxu0 0.0
    %120 = vmatpush2.msra.mxu0 0.0
    %121 = vmatprep.mubr.f32.mxu0 0.0
    %122 = vmatmul.mubr.f32.gmra.mxu0 %v55
    %v123 = vpop.f32.mrf.mxu0
    %v124 = vadd.f32 %v51, %v123
    %v125 = vpop.f32.mrf.mxu0
    %126 = vdwg.mxu0
    %127 = vst [vmem:[#allocation7] sm:$0xff] %v124
    // Predicated region
    $region22: #{tpu_custom_call.1} parent=1 // pred_check
      _
    $region23: #{tpu_custom_call.1} parent=1 // pred_check_branch
      %129 = sbr.rel (0) target = $region25
    $region24: #{tpu_custom_call.1} parent=1 // pred_region
      %s131 = ssub.s32 128, 128
      %132 = vsyncadd [#allocation4], %s131
      %s134 = sshll.u32 [#allocation7], 4
      %s135 = int_to_ptr.vmem [resolvable:$true] %s134
      %137 = dma.vmem_to_hbm [thread:$0]  %s135, 128, %s3, [#allocation4]
    $region25: #{tpu_custom_call.1} parent=1 // pred_fallthru
      _
    // Predicated region
    $region26: #{tpu_custom_call.1} parent=1 // pred_check
      _
    $region27: #{tpu_custom_call.1} parent=1 // pred_check_branch
      %139 = sbr.rel (0) target = $region29
    $region28: #{tpu_custom_call.1} parent=1 // pred_region
      %140 = dma.done [#allocation4], 128
    $region29: #{tpu_custom_call.1} parent=1 // pred_fallthru
      _
    %141 = vsyncpa [#allocation3], 1
    %142 = vsyncpa [#allocation6], 1
    %143 = vsyncpa [#allocation4], 1

</llo_original>
